<compile_context>
chip_gen: v7x
topology: tpu7x:2x2x1
jax: 0.10.0
libtpu: 0.0.40
codegen_flags: <defaults>
</compile_context>

<pallas_src>
import numpy as np
import jax
import jax.numpy as jnp
from jax.experimental import pallas as pl
from jax.experimental.pallas import tpu as pltpu


def position_embedding(seq_len: int, emb_size: int) -> np.ndarray:
    """Exact replica of the PyTorch PositionEmbedding() helper."""
    emb = np.ones((seq_len, emb_size), dtype=np.float32)
    for i in range(seq_len):
        for j in range(emb_size):
            if j % 2 == 0:
                emb[i, j] = np.sin(i / pow(10000, j / emb_size))
            else:
                emb[i, j] = np.cos(i / pow(10000, (j - 1) / emb_size))
    return emb


def _round_up(x: int, m: int) -> int:
    return ((x + m - 1) // m) * m


def patch_proj_kernel(p_ref, w_ref, pos_ref, o_ref):
    # p_ref:   (tn, Kp)  flattened patches (bf16 or f32), row 0 of each image is a zero row
    # w_ref:   (Kp, Ep)  projection weight, VMEM-resident (constant index_map)
    # pos_ref: (tn, Ep)  f32 positional rows with conv bias folded in (row 0 = cls + pos[0])
    # o_ref:   (tn, Ep)  output tile (f32 or bf16)
    acc = jnp.dot(p_ref[...], w_ref[...], preferred_element_type=jnp.float32)
    o_ref[...] = (acc + pos_ref[...]).astype(o_ref.dtype)


def _choose_seq_tile(S, patch_row_bytes, E_pad, out_itemsize, budget_bytes):
    """MXU-aligned sequence tile whose double-buffered streams fit the VMEM budget."""
    row_bytes = patch_row_bytes + 4 * E_pad + out_itemsize * E_pad   # patch + f32 pos + out
    max_rows = max(16, budget_bytes // (2 * row_bytes))              # 2x: double buffering
    # Whole (padded) image sequence per grid step when it fits: >=16 rows (bf16 sublane
    # packing), 128-aligned once the sequence is MXU-sized.
    full = _round_up(S, 16) if S <= 128 else _round_up(S, 128)
    if full <= max_rows:
        return full
    # Otherwise split the sequence into the largest MXU-aligned tile under the budget.
    for align in (256, 128, 16):
        tn = (max_rows // align) * align
        if tn >= align:
            return min(tn, 1024)
    return 16


def patch_embedding(x, conv_w, conv_b, cls_token, pos_embed, patch_size, *,
                    block_rows=None,
                    compute_dtype=jnp.bfloat16,
                    out_dtype=jnp.float32,
                    vmem_stream_budget_bytes=16 * 1024 * 1024):
    """x: (B, C, H, W) f32.  Returns (B, (H//P)*(W//P) + 1, E) in out_dtype (cls row first)."""
    B, C, H, W = x.shape
    P = patch_size
    E = conv_w.shape[0]
    assert H % P == 0 and W % P == 0, "spatial dims must be divisible by patch_size"
    nh, nw = H // P, W // P
    N = nh * nw
    K = C * P * P
    S = N + 1                                   # +1: cls token row

    # Lane-dense padding of contraction / embedding axes (only bites when < 128, e.g. toys).
    K_pad = _round_up(K, 128)
    E_pad = _round_up(E, 128)

    itemsize = jnp.dtype(compute_dtype).itemsize
    out_itemsize = jnp.dtype(out_dtype).itemsize

    if block_rows is None:
        tn = _choose_seq_tile(S, K_pad * itemsize, E_pad, out_itemsize,
                              vmem_stream_budget_bytes)
    else:
        tn = max(16, _round_up(min(block_rows, S), 16))
    num_tiles = pl.cdiv(S, tn)
    S_pad = num_tiles * tn                      # patches / pos padded; output edge is masked

    # ---- glue: im2col in (c, ph, pw) order == Conv2d contraction order ----
    patches = (x.reshape(B, C, nh, P, nw, P)
                 .transpose(0, 2, 4, 1, 3, 5)
                 .reshape(B, N, K)
                 .astype(compute_dtype))
    # One fused pad does three jobs: (a) one zero row in the cls slot (0 @ W == 0, so the
    # kernel writes the full (B, S, E) result directly), (b) tail rows so the sequence axis
    # covers whole tiles, (c) zero K-columns so the contraction axis is lane-dense.
    patches = jnp.pad(patches, ((0, 0), (1, S_pad - S), (0, K_pad - K)))

    # Projection weight (K, E) -> padded (K_pad, E_pad); stays VMEM-resident.
    w_mat = jnp.pad(conv_w.reshape(E, K).T.astype(compute_dtype),
                    ((0, K_pad - K), (0, E_pad - E)))

    # Fold conv bias + cls token into one small streamed table (never tiled by batch).
    cls_row = cls_token.reshape(1, E) + pos_embed[0:1]           # row 0: cls + pos[0]
    patch_rows = pos_embed[1:] + conv_b.reshape(1, E)            # rows 1..N: pos + bias
    pos_table = jnp.concatenate([cls_row, patch_rows], axis=0).astype(jnp.float32)
    pos_table = jnp.pad(pos_table, ((0, S_pad - S), (0, E_pad - E)))

    cost = pl.CostEstimate(
        flops=2 * B * S_pad * K_pad * E_pad,
        transcendentals=0,
        bytes_accessed=(B * S_pad * K_pad * itemsize        # patch stream
                        + K_pad * E_pad * itemsize          # weight, fetched once
                        + S_pad * E_pad * 4                 # pos table, once per seq tile
                        + B * S * E_pad * out_itemsize))    # output stream

    def _build(weight_single_buffered):
        if weight_single_buffered:
            # Constant index_map -> no reason to double-buffer; frees K_pad*E_pad*itemsize
            # of VMEM (most valuable under v7x's 64 MiB).
            w_spec = pl.BlockSpec((K_pad, E_pad), lambda n, b: (0, 0),
                                  pipeline_mode=pl.Buffered(1))
        else:
            w_spec = pl.BlockSpec((K_pad, E_pad), lambda n, b: (0, 0))
        return pl.pallas_call(
            patch_proj_kernel,
            out_shape=jax.ShapeDtypeStruct((B, S, E_pad), out_dtype),
            # Batch innermost: pos block index (n, 0) is constant across the inner loop so
            # its DMA is skipped for B-1 of every B consecutive steps.
            grid=(num_tiles, B),
            in_specs=[
                pl.BlockSpec((None, tn, K_pad), lambda n, b: (b, n, 0)),   # per-image seq tile
                w_spec,                                                    # resident weight
                pl.BlockSpec((tn, E_pad), lambda n, b: (n, 0)),            # pos(+bias,+cls)
            ],
            # Kernel writes the final (B, S, E_pad) tensor directly; the last tile's
            # out-of-bounds rows (when tn does not divide S) are masked on store.
            out_specs=pl.BlockSpec((None, tn, E_pad), lambda n, b: (b, n, 0)),
            compiler_params=pltpu.CompilerParams(
                # No reduction axis: every output block is independent -> both axes parallel
                # (lets v7x shard across its two TensorCores; harmless on v5e/v6e).
                dimension_semantics=("parallel", "parallel"),
                # <= v7x guidance (64 MiB phys); well above the 16 MiB stream budget; raises
                # v5e's 16 MiB scoped default.
                vmem_limit_bytes=48 * 1024 * 1024,
            ),
            cost_estimate=cost,
        )

    try:
        out = _build(True)(patches, w_mat, pos_table)
    except Exception:
        # Fallback if this JAX version rejects pl.Buffered(1) on a pallas_call BlockSpec.
        out = _build(False)(patches, w_mat, pos_table)

    if E_pad != E:
        out = out[..., :E]          # only taken for toy embed dims < 128
    return out


def _reference(x, conv_w, conv_b, cls_token, pos_embed, patch_size):
    """Pure-JAX reference mirroring the PyTorch forward."""
    B = x.shape[0]
    E = conv_w.shape[0]
    y = jax.lax.conv_general_dilated(
        x, conv_w,
        window_strides=(patch_size, patch_size),
        padding="VALID",
        dimension_numbers=("NCHW", "OIHW", "NCHW"),
    ) + conv_b.reshape(1, E, 1, 1)
    y = y.reshape(B, E, -1).transpose(0, 2, 1)                    # b e (h w) -> b (h w) e
    cls = jnp.broadcast_to(cls_token.reshape(1, 1, E), (B, 1, E))
    y = jnp.concatenate([cls, y], axis=1)
    return y + pos_embed[None, :, :]


if __name__ == "__main__":
    # Small shapes consistent with the module: in_channels=4, patch_size=4, emb_size=32,
    # img_size=16  ->  (16/4)^2 = 16 patches, seq_len = 17.
    B, C, H, W = 2, 4, 16, 16
    P, E = 4, 32
    seq_len = (H // P) * (W // P) + 1

    key = jax.random.PRNGKey(0)
    kx, kw, kb, kc = jax.random.split(key, 4)

    x = jax.random.normal(kx, (B, C, H, W), dtype=jnp.float32)
    conv_w = jax.random.normal(kw, (E, C, P, P), dtype=jnp.float32) * 0.02
    conv_b = jax.random.normal(kb, (E,), dtype=jnp.float32) * 0.02
    cls_token = jax.random.uniform(kc, (1, 1, E), dtype=jnp.float32)   # torch.rand
    pos_embed = jnp.asarray(position_embedding(seq_len, E))

    ref = _reference(x, conv_w, conv_b, cls_token, pos_embed, P)

    # Default path: bf16 operands into the MXU, f32 accumulation + f32 pos/bias/cls add.
    out = patch_embedding(x, conv_w, conv_b, cls_token, pos_embed, P)
    out = jax.block_until_ready(out)
    assert out.shape == (B, seq_len, E), out.shape
    np.testing.assert_allclose(np.asarray(out), np.asarray(ref), rtol=2e-2, atol=2e-2)

    # f32-operand path (structure check; tolerance allows for MXU default-precision drift).
    out_f32 = patch_embedding(x, conv_w, conv_b, cls_token, pos_embed, P,
                              compute_dtype=jnp.float32)
    out_f32 = jax.block_until_ready(out_f32)
    np.testing.assert_allclose(np.asarray(out_f32), np.asarray(ref), rtol=2e-3, atol=2e-3)

    # bf16 activation-output path (halves the output HBM stream).
    out_bf16 = patch_embedding(x, conv_w, conv_b, cls_token, pos_embed, P,
                               out_dtype=jnp.bfloat16)
    out_bf16 = jax.block_until_ready(out_bf16)
    np.testing.assert_allclose(np.asarray(out_bf16, dtype=np.float32), np.asarray(ref),
                               rtol=4e-2, atol=4e-2)

    print("KERNEL_OK")
</pallas_src>

<mosaic_0001>
module attributes {stable_mosaic.version = 11 : i64} {
  func.func @patch_proj_kernel(%arg0: i32, %arg1: i32, %arg2: memref<1x32x128xbf16, #tpu.memory_space<vmem>>, %arg3: memref<128x128xbf16, #tpu.memory_space<vmem>>, %arg4: memref<32x128xf32, #tpu.memory_space<vmem>>, %arg5: memref<1x32x128xf32, #tpu.memory_space<vmem>>) attributes {dimension_semantics = [#tpu.dimension_semantics<parallel>, #tpu.dimension_semantics<parallel>], iteration_bounds = array<i64: 1, 2>, scalar_prefetch = 0 : i64, scratch_operands = 0 : i64, tpu.core_type = #tpu.core_type<tc>, window_params = [{transform_indices = @transform_0, window_bounds = array<i64: 1, 32, 128>}, {pipeline_mode = #tpu.pipeline_mode<synchronous>, transform_indices = @transform_1, window_bounds = array<i64: 128, 128>}, {transform_indices = @transform_2, window_bounds = array<i64: 32, 128>}, {transform_indices = @transform_3, window_bounds = array<i64: 1, 32, 128>}]} {
    %c0 = arith.constant 0 : index
    %c0_0 = arith.constant 0 : index
    %c0_1 = arith.constant 0 : index
    %0 = vector.load %arg2[%c0, %c0_0, %c0_1] : memref<1x32x128xbf16, #tpu.memory_space<vmem>>, vector<1x32x128xbf16>
    %1 = vector.shape_cast %0 : vector<1x32x128xbf16> to vector<32x128xbf16>
    %c0_2 = arith.constant 0 : index
    %c0_3 = arith.constant 0 : index
    %2 = vector.load %arg3[%c0_2, %c0_3] : memref<128x128xbf16, #tpu.memory_space<vmem>>, vector<128x128xbf16>
    %cst = arith.constant dense<0.000000e+00> : vector<32x128xf32>
    %3 = tpu.matmul %1, %2, %cst {dimension_numbers = #tpu.dot_dimension_numbers<[1], [0], [0], [1], [0, 0, 1, 1], [], []>} : vector<32x128xbf16>, vector<128x128xbf16>, vector<32x128xf32> -> vector<32x128xf32>
    %c0_4 = arith.constant 0 : index
    %c0_5 = arith.constant 0 : index
    %4 = vector.load %arg4[%c0_4, %c0_5] : memref<32x128xf32, #tpu.memory_space<vmem>>, vector<32x128xf32>
    %5 = arith.addf %3, %4 : vector<32x128xf32>
    %c0_6 = arith.constant 0 : index
    %c0_7 = arith.constant 0 : index
    %c0_8 = arith.constant 0 : index
    %6 = vector.load %arg5[%c0_6, %c0_7, %c0_8] : memref<1x32x128xf32, #tpu.memory_space<vmem>>, vector<1x32x128xf32>
    %7 = vector.shape_cast %6 : vector<1x32x128xf32> to vector<32x128xf32>
    %8 = vector.shape_cast %5 : vector<32x128xf32> to vector<1x32x128xf32>
    tpu.vector_store %arg5[%c0_6, %c0_7, %c0_8], %8 {strides = array<i32>} : memref<1x32x128xf32, #tpu.memory_space<vmem>>, vector<1x32x128xf32>,
    return
  }
  func.func @transform_0(%arg0: i32, %arg1: i32) -> (i32, i32, i32) {
    %c0_i32 = arith.constant 0 : i32
    %c0_i32_0 = arith.constant 0 : i32
    return %arg1, %arg0, %c0_i32 : i32, i32, i32
  }
  func.func @transform_1(%arg0: i32, %arg1: i32) -> (i32, i32) {
    %c0_i32 = arith.constant 0 : i32
    %c0_i32_0 = arith.constant 0 : i32
    %c0_i32_1 = arith.constant 0 : i32
    return %c0_i32, %c0_i32_0 : i32, i32
  }
  func.func @transform_2(%arg0: i32, %arg1: i32) -> (i32, i32) {
    %c0_i32 = arith.constant 0 : i32
    %c0_i32_0 = arith.constant 0 : i32
    return %arg0, %c0_i32 : i32, i32
  }
  func.func @transform_3(%arg0: i32, %arg1: i32) -> (i32, i32, i32) {
    %c0_i32 = arith.constant 0 : i32
    %c0_i32_0 = arith.constant 0 : i32
    return %arg1, %arg0, %c0_i32 : i32, i32, i32
  }
}

module attributes {stable_mosaic.version = 11 : i64} {
  func.func @patch_proj_kernel(%arg0: i32, %arg1: i32, %arg2: memref<1x32x128xbf16, #tpu.memory_space<vmem>>, %arg3: memref<128x128xbf16, #tpu.memory_space<vmem>>, %arg4: memref<32x128xf32, #tpu.memory_space<vmem>>, %arg5: memref<1x32x128xf32, #tpu.memory_space<vmem>>) attributes {dimension_semantics = [#tpu.dimension_semantics<parallel>, #tpu.dimension_semantics<parallel>], iteration_bounds = array<i64: 1, 2>, scalar_prefetch = 0 : i64, scratch_operands = 0 : i64, tpu.core_type = #tpu.core_type<tc>, window_params = [{transform_indices = @transform_0, window_bounds = array<i64: 1, 32, 128>}, {pipeline_mode = #tpu.pipeline_mode<synchronous>, transform_indices = @transform_1, window_bounds = array<i64: 128, 128>}, {transform_indices = @transform_2, window_bounds = array<i64: 32, 128>}, {transform_indices = @transform_3, window_bounds = array<i64: 1, 32, 128>}]} {
    %c0 = arith.constant 0 : index
    %c0_0 = arith.constant 0 : index
    %c0_1 = arith.constant 0 : index
    %0 = vector.load %arg2[%c0, %c0_0, %c0_1] : memref<1x32x128xbf16, #tpu.memory_space<vmem>>, vector<1x32x128xbf16>
    %1 = vector.shape_cast %0 : vector<1x32x128xbf16> to vector<32x128xbf16>
    %c0_2 = arith.constant 0 : index
    %c0_3 = arith.constant 0 : index
    %2 = vector.load %arg3[%c0_2, %c0_3] : memref<128x128xbf16, #tpu.memory_space<vmem>>, vector<128x128xbf16>
    %cst = arith.constant dense<0.000000e+00> : vector<32x128xf32>
    %3 = tpu.matmul %1, %2, %cst {dimension_numbers = #tpu.dot_dimension_numbers<[1], [0], [0], [1], [0, 0, 1, 1], [], []>} : vector<32x128xbf16>, vector<128x128xbf16>, vector<32x128xf32> -> vector<32x128xf32>
    %c0_4 = arith.constant 0 : index
    %c0_5 = arith.constant 0 : index
    %4 = vector.load %arg4[%c0_4, %c0_5] : memref<32x128xf32, #tpu.memory_space<vmem>>, vector<32x128xf32>
    %5 = arith.addf %3, %4 : vector<32x128xf32>
    %c0_6 = arith.constant 0 : index
    %c0_7 = arith.constant 0 : index
    %c0_8 = arith.constant 0 : index
    %6 = vector.load %arg5[%c0_6, %c0_7, %c0_8] : memref<1x32x128xf32, #tpu.memory_space<vmem>>, vector<1x32x128xf32>
    %7 = vector.shape_cast %6 : vector<1x32x128xf32> to vector<32x128xf32>
    %8 = vector.shape_cast %5 : vector<32x128xf32> to vector<1x32x128xf32>
    tpu.vector_store %arg5[%c0_6, %c0_7, %c0_8], %8 {strides = array<i32>} : memref<1x32x128xf32, #tpu.memory_space<vmem>>, vector<1x32x128xf32>,
    return
  }
  func.func @transform_0(%arg0: i32, %arg1: i32) -> (i32, i32, i32) {
    %c0_i32 = arith.constant 0 : i32
    %c0_i32_0 = arith.constant 0 : i32
    return %arg1, %arg0, %c0_i32 : i32, i32, i32
  }
  func.func @transform_1(%arg0: i32, %arg1: i32) -> (i32, i32) {
    %c0_i32 = arith.constant 0 : i32
    %c0_i32_0 = arith.constant 0 : i32
    %c0_i32_1 = arith.constant 0 : i32
    return %c0_i32, %c0_i32_0 : i32, i32
  }
  func.func @transform_2(%arg0: i32, %arg1: i32) -> (i32, i32) {
    %c0_i32 = arith.constant 0 : i32
    %c0_i32_0 = arith.constant 0 : i32
    return %arg0, %c0_i32 : i32, i32
  }
  func.func @transform_3(%arg0: i32, %arg1: i32) -> (i32, i32, i32) {
    %c0_i32 = arith.constant 0 : i32
    %c0_i32_0 = arith.constant 0 : i32
    return %arg1, %arg0, %c0_i32 : i32, i32, i32
  }
}

</mosaic_0001>

<llo_original>
// kernel: tpu_custom_call.1
$region0: #{tpu_custom_call.1}
  #allocation0 [shape = 'u32[]', space=smem, size = 0x4, offset = 0x4, fixed_abs, tag = 'smem constant byte address 0x4 - core index']
  #allocation1 [shape = 'u32[144,128]{1,0:T(1,128)}', space=vmem, size = 0x12000, scoped, tag = 'internal scratch']
  %s0 = inlined_call_operand.hbm [shape: bf16[2,32,128], index: 0, kind: input, shape index: {}]
  %s1 = inlined_call_operand.hbm [shape: bf16[128,128], index: 1, kind: input, shape index: {}]
  %s2 = inlined_call_operand.hbm [shape: f32[32,128], index: 2, kind: input, shape index: {}]
  %s3 = inlined_call_operand.vmem [shape: f32[2,17,128], index: 3, kind: output, shape index: {}]
  %s4 = sld [smem:[#allocation0]]
  $region105: #{tpu_custom_call.1} parent=0
    _
  %s6 = ssub.s32 1, %s4
  %s7 = scalar_select 0, %s6, %s4
  $region1: #{tpu_custom_call.1} parent=0
    #allocation2 [shape = 'u8[16384]{0}', space=vmem, size = 0x4000, scoped, tag = 'input window, operand 0']
    #allocation3 [shape = 's32[2]{0}', space=sflag, size = 0x8, scoped, tag = 'scoped memory for tpu_custom_call.1']
    #allocation4 [shape = 'u8[32768]{0}', space=vmem, size = 0x8000, scoped, tag = 'input window, operand 1, single buffered']
    #allocation5 [shape = 's32[1]{0}', space=sflag, size = 0x4, scoped, tag = 'scoped memory for tpu_custom_call.1']
    #allocation6 [shape = 'u8[16384]{0}', space=vmem, size = 0x4000, scoped, tag = 'input window, operand 2, single buffered']
    #allocation7 [shape = 'u8[32768]{0}', space=vmem, size = 0x8000, scoped, tag = 'output window, operand 0']
    %8 = vsyncpa [#allocation3], 0
    %s9 = scalar_lea.sflag [#allocation3], 1
    %10 = vsyncpa %s9, 0
    %11 = vsyncpa [#allocation5], 0
    loop: start=0, step=1, limit=4
    $region2: #{tpu_custom_call.1} parent=1 // loop_pre_header
      _
    $region3: #{tpu_custom_call.1} parent=1 // loop_header
      %s13 = sphi 0, %s17
      %p14 = scmp.ge.s32.totalorder %s13, 4
      %s20 = sphi 0, %s32
      %s21 = sphi 0, %s28
      %s22 = sphi 0, %s20
      %s23 = sphi 0, %s21
      %s24 = sphi 0, %s22
      %s25 = sphi 0, %s23
      %s37 = sphi 0, %s39
      %s40 = sphi 0, %s37
      %s41 = sphi 0, %s40
      %s57 = sphi 0, %s41
      %s61 = sphi 0, %s61
      %s63 = sphi 0, %s61
      %s64 = sphi 0, %s63
      %s78 = sphi 0, %s64
      %s84 = sphi 0, %s86
      %s87 = sphi 0, %s84
      %s88 = sphi 0, %s87
      %s104 = sphi 0, %s88
      %s112 = sphi 0, %s114
      %s115 = sphi 0, %s112
      %s116 = sphi 0, %s115
      %s132 = sphi 0, %s116
    $region4: #{tpu_custom_call.1} parent=1 // loop_header_branch
      %16 = sbr.rel (%p14) target = $region8
    $region5: #{tpu_custom_call.1} parent=1 // loop_body
      %s18 = ssub.s32 %s13, 1
      %s19 = ssub.s32 %s13, 2
      %s26 = sadd.s32 1, %s21
      %p27 = scmp.ge.s32.totalorder %s26, 2
      %s28 = scalar_select %p27, 0, %s26
      %s29 = sadd.s32 1, %s20
      %s30 = scalar_select %p27, %s29, %s20
      %p31 = scmp.ge.s32.totalorder %s30, 1
      %s32 = scalar_select %p31, 0, %s30
      %s33 = ssub.s32 %s21, %s28
      %s34 = ssub.s32 %s20, %s32
      %s35 = sor.u32 %s33, %s34
      %p36 = scmp.eq.s32.totalorder %s35, 0
      %s38 = sadd.s32 %s37, 1
      %s39 = scalar_select %p36, %s37, %s38
      %p42 = pneg %p36
      %p43 = scmp.eq.s32.totalorder %s13, 1
      %p44 = por %p42, %p43
      %p45 = scmp.ne.s32.totalorder %s37, %s40
      %p46 = scmp.eq.s32.totalorder %s13, 0
      %p47 = por %p45, %p46
      %p48 = scmp.ne.s32.totalorder %s37, %s40
      %p49 = scmp.eq.s32.totalorder %s18, 1
      %p50 = por %p48, %p49
      %p51 = scmp.ne.s32.totalorder %s40, %s41
      %p52 = scmp.eq.s32.totalorder %s18, 0
      %p53 = por %p51, %p52
      %p54 = scmp.ne.s32.totalorder %s40, %s41
      %p55 = scmp.eq.s32.totalorder %s19, 1
      %p56 = por %p54, %p55
      %p58 = scmp.ne.s32.totalorder %s41, %s57
      %p59 = scmp.eq.s32.totalorder %s19, 0
      %p60 = por %p58, %p59
      %s62 = sadd.s32 %s61, 1
      %p65 = scmp.eq.s32.totalorder %s13, 1
      %p66 = scmp.ne.s32.totalorder %s61, %s63
      %p67 = scmp.eq.s32.totalorder %s13, 0
      %p68 = por %p66, %p67
      %p69 = scmp.ne.s32.totalorder %s61, %s63
      %p70 = scmp.eq.s32.totalorder %s18, 1
      %p71 = por %p69, %p70
      %p72 = scmp.ne.s32.totalorder %s63, %s64
      %p73 = scmp.eq.s32.totalorder %s18, 0
      %p74 = por %p72, %p73
      %p75 = scmp.ne.s32.totalorder %s63, %s64
      %p76 = scmp.eq.s32.totalorder %s19, 1
      %p77 = por %p75, %p76
      %p79 = scmp.ne.s32.totalorder %s64, %s78
      %p80 = scmp.eq.s32.totalorder %s19, 0
      %p81 = por %p79, %p80
      %s82 = ssub.s32 %s20, %s32
      %p83 = scmp.eq.s32.totalorder %s82, 0
      %s85 = sadd.s32 %s84, 1
      %s86 = scalar_select %p83, %s84, %s85
      %p89 = pneg %p83
      %p90 = scmp.eq.s32.totalorder %s13, 1
      %p91 = por %p89, %p90
      %p92 = scmp.ne.s32.totalorder %s84, %s87
      %p93 = scmp.eq.s32.totalorder %s13, 0
      %p94 = por %p92, %p93
      %p95 = scmp.ne.s32.totalorder %s84, %s87
      %p96 = scmp.eq.s32.totalorder %s18, 1
      %p97 = por %p95, %p96
      %p98 = scmp.ne.s32.totalorder %s87, %s88
      %p99 = scmp.eq.s32.totalorder %s18, 0
      %p100 = por %p98, %p99
      %p101 = scmp.ne.s32.totalorder %s87, %s88
      %p102 = scmp.eq.s32.totalorder %s19, 1
      %p103 = por %p101, %p102
      %p105 = scmp.ne.s32.totalorder %s88, %s104
      %p106 = scmp.eq.s32.totalorder %s19, 0
      %p107 = por %p105, %p106
      %s108 = ssub.s32 %s21, %s28
      %s109 = ssub.s32 %s20, %s32
      %s110 = sor.u32 %s108, %s109
      %p111 = scmp.eq.s32.totalorder %s110, 0
      %s113 = sadd.s32 %s112, 1
      %s114 = scalar_select %p111, %s112, %s113
      %p117 = pneg %p111
      %p118 = scmp.eq.s32.totalorder %s13, 1
      %p119 = por %p117, %p118
      %p120 = scmp.ne.s32.totalorder %s112, %s115
      %p121 = scmp.eq.s32.totalorder %s13, 0
      %p122 = por %p120, %p121
      %p123 = scmp.ne.s32.totalorder %s112, %s115
      %p124 = scmp.eq.s32.totalorder %s18, 1
      %p125 = por %p123, %p124
      %p126 = scmp.ne.s32.totalorder %s115, %s116
      %p127 = scmp.eq.s32.totalorder %s18, 0
      %p128 = por %p126, %p127
      %p129 = scmp.ne.s32.totalorder %s115, %s116
      %p130 = scmp.eq.s32.totalorder %s19, 1
      %p131 = por %p129, %p130
      %p133 = scmp.ne.s32.totalorder %s116, %s132
      %p134 = scmp.eq.s32.totalorder %s19, 0
      %p135 = por %p133, %p134
      %p136 = scmp.le.s32.totalorder 1, %s13
      %p137 = scmp.lt.s32.totalorder %s13, 3
      %p138 = pnand %p136, %p137
      %p139 = pneg %p138
      // Predicated region
      $region9: #{tpu_custom_call.1} parent=5 // pred_check
        _
      $region10: #{tpu_custom_call.1} parent=5 // pred_check_branch
        %141 = sbr.rel (%p138) target = $region12
      $region11: #{tpu_custom_call.1} parent=5 // pred_region
        %s142 = ssub.s32 %s13, 1
        // Predicated region
        $region13: #{tpu_custom_call.1} parent=11 // pred_check
          %p143 = pneg %p74
        $region14: #{tpu_custom_call.1} parent=11 // pred_check_branch
          %145 = sbr.rel (%p143) target = $region16
        $region15: #{tpu_custom_call.1} parent=11 // pred_region
          %s147 = ssub.s32 1024, 1024
          %148 = vsyncadd [#allocation5], %s147
          %s149 = sshll.u32 [#allocation4], 4
          %s150 = int_to_ptr.vmem [resolvable:$true] %s149
          %155 = dma.hbm_to_vmem [thread:$0]  %s1, 1024, %s150, [#allocation5], 64, 64, 4
        $region16: #{tpu_custom_call.1} parent=11 // pred_fallthru
          _
        // Predicated region
        $region17: #{tpu_custom_call.1} parent=11 // pred_check
          %p156 = pneg %p100
        $region18: #{tpu_custom_call.1} parent=11 // pred_check_branch
          %158 = sbr.rel (%p156) target = $region20
        $region19: #{tpu_custom_call.1} parent=11 // pred_region
          %s159 = smul.u32 4, %s22
          %s161 = ssub.s32 512, 512
          %162 = vsyncadd [#allocation5], %s161
          %s163 = smul.addr %s159, 128
          %s164 = scalar_lea.hbm %s2, %s163
          %s165 = sshll.u32 [#allocation6], 4
          %s166 = int_to_ptr.vmem [resolvable:$true] %s165
          %171 = dma.hbm_to_vmem [thread:$0]  %s164, 512, %s166, [#allocation5], 128, 128, 8
        $region20: #{tpu_custom_call.1} parent=11 // pred_fallthru
          _
      $region12: #{tpu_custom_call.1} parent=5 // pred_fallthru
        _
      %p172 = scmp.lt.s32.totalorder %s13, 2
      // Predicated region
      $region21: #{tpu_custom_call.1} parent=5 // pred_check
        %p173 = pneg %p172
      $region22: #{tpu_custom_call.1} parent=5 // pred_check_branch
        %175 = sbr.rel (%p173) target = $region24
      $region23: #{tpu_custom_call.1} parent=5 // pred_region
        // Predicated region
        $region25: #{tpu_custom_call.1} parent=23 // pred_check
          %p176 = pneg %p47
        $region26: #{tpu_custom_call.1} parent=23 // pred_check_branch
          %178 = sbr.rel (%p176) target = $region28
        $region27: #{tpu_custom_call.1} parent=23 // pred_region
          %s179 = sand.u32 %s37, 1
          %s180 = scalar_lea.sflag [#allocation3], %s179
          %s181 = sand.u32 %s37, 1
          %s182 = smul.addr %s181, 16
          %s183 = scalar_lea.vmem [#allocation2], %s182
          %s184 = smul.u32 4, %s20
          %s186 = ssub.s32 256, 256
          %187 = vsyncadd %s180, %s186
          %s188 = smul.addr %s21, 4
          %s189 = sadd.s32 %s184, %s188
          %s190 = smul.addr %s189, 64
          %s191 = scalar_lea.hbm %s0, %s190
          %s192 = sshll.u32 %s183, 4
          %s193 = int_to_ptr.vmem [resolvable:$true] %s192
          %198 = dma.hbm_to_vmem [thread:$0]  %s191, 256, %s193, %s180, 64, 64, 4
        $region28: #{tpu_custom_call.1} parent=23 // pred_fallthru
          _
      $region24: #{tpu_custom_call.1} parent=5 // pred_fallthru
        _
      %p199 = scmp.le.s32.totalorder 1, %s13
      %p200 = scmp.lt.s32.totalorder %s13, 3
      %p201 = pnand %p199, %p200
      %p202 = pneg %p201
      // Predicated region
      $region29: #{tpu_custom_call.1} parent=5 // pred_check
        _
      $region30: #{tpu_custom_call.1} parent=5 // pred_check_branch
        %204 = sbr.rel (%p201) target = $region32
      $region31: #{tpu_custom_call.1} parent=5 // pred_region
        %s205 = ssub.s32 %s13, 1
        %s206 = sand.u32 %s40, 1
        %s207 = scalar_lea.sflag [#allocation3], %s206
        %s208 = sand.u32 %s40, 1
        %s209 = smul.addr %s208, 16
        %s210 = scalar_lea.vmem [#allocation2], %s209
        // Predicated region
        $region33: #{tpu_custom_call.1} parent=31 // pred_check
          %p211 = pneg %p53
        $region34: #{tpu_custom_call.1} parent=31 // pred_check_branch
          %213 = sbr.rel (%p211) target = $region36
        $region35: #{tpu_custom_call.1} parent=31 // pred_region
          %214 = dma.done %s207, 256
        $region36: #{tpu_custom_call.1} parent=31 // pred_fallthru
          _
        // Predicated region
        $region37: #{tpu_custom_call.1} parent=31 // pred_check
          %p215 = pneg %p74
        $region38: #{tpu_custom_call.1} parent=31 // pred_check_branch
          %217 = sbr.rel (%p215) target = $region40
        $region39: #{tpu_custom_call.1} parent=31 // pred_region
          %218 = dma.done [#allocation5], 1024
        $region40: #{tpu_custom_call.1} parent=31 // pred_fallthru
          _
        // Predicated region
        $region41: #{tpu_custom_call.1} parent=31 // pred_check
          %p219 = pneg %p100
        $region42: #{tpu_custom_call.1} parent=31 // pred_check_branch
          %221 = sbr.rel (%p219) target = $region44
        $region43: #{tpu_custom_call.1} parent=31 // pred_region
          %222 = dma.done [#allocation5], 512
        $region44: #{tpu_custom_call.1} parent=31 // pred_fallthru
          _
        %s223 = sand.u32 %s40, 1
        %s224 = scalar_lea.sflag [#allocation3], %s223
        %s225 = sand.u32 %s40, 1
        %s226 = smul.addr %s225, 16
        %s227 = scalar_lea.vmem [#allocation2], %s226
        %p228 = pneg %p53
        %p229 = pneg %p50
        %p230 = pneg %p74
        %p231 = pneg %p71
        %p232 = pneg %p100
        %p233 = pneg %p97
        %p234 = pneg %p128
        %p235 = pneg %p125
        %s236 = sand.u32 %s115, 1
        %s237 = sand.u32 %s115, 1
        %s238 = smul.addr %s237, 32
        %s239 = scalar_lea.vmem [#allocation7], %s238
        %s240 = smul.u32 4, %s22
        %s241 = smul.u32 4, %s22
        %s242 = smul.u32 4, %s22
        %s243 = ssub.s32 3, %s242
        %s244 = smul.u32 128, %s243
        %v246 = vld [vmem:[%s210] sm:$0xf]
        %v247 = vld [vmem:[%s210 + $0x4] sm:$0xf]
        %v248 = vld [vmem:[%s210 + $0x8] sm:$0xf]
        %v249 = vld [vmem:[%s210 + $0xc] sm:$0xf]
        %v250 = vld [vmem:[#allocation4] sm:$0xf]
        %v251 = vld [vmem:[#allocation4 + $0x4] sm:$0xf]
        %v252 = vld [vmem:[#allocation4 + $0x8] sm:$0xf]
        %v253 = vld [vmem:[#allocation4 + $0xc] sm:$0xf]
        %v254 = vld [vmem:[#allocation4 + $0x10] sm:$0xf]
        %v255 = vld [vmem:[#allocation4 + $0x14] sm:$0xf]
        %v256 = vld [vmem:[#allocation4 + $0x18] sm:$0xf]
        %v257 = vld [vmem:[#allocation4 + $0x1c] sm:$0xf]
        %v258 = vld [vmem:[#allocation4 + $0x20] sm:$0xf]
        %v259 = vld [vmem:[#allocation4 + $0x24] sm:$0xf]
        %v260 = vld [vmem:[#allocation4 + $0x28] sm:$0xf]
        %v261 = vld [vmem:[#allocation4 + $0x2c] sm:$0xf]
        %v262 = vld [vmem:[#allocation4 + $0x30] sm:$0xf]
        %v263 = vld [vmem:[#allocation4 + $0x34] sm:$0xf]
        %v264 = vld [vmem:[#allocation4 + $0x38] sm:$0xf]
        %v265 = vld [vmem:[#allocation4 + $0x3c] sm:$0xf]
        %v266 = vld [vmem:[#allocation6] sm:$0xff]
        %v267 = vld [vmem:[#allocation6 + $0x8] sm:$0xff]
        %v268 = vld [vmem:[#allocation6 + $0x10] sm:$0xff]
        %v269 = vld [vmem:[#allocation6 + $0x18] sm:$0xff]
        %v274 = vunpack.c.l.b16 %v246
        %v275 = vunpack.c.l.b16 %v247
        %v276 = vunpack.c.l.b16 %v248
        %v277 = vunpack.c.l.b16 %v249
        %v278 = vpack.c.b16 %v275, %v274
        %v279 = vpack.c.b16 %v277, %v276
        %v298 = vunpack.c.l.b16 %v250
        %v299 = vunpack.c.l.b16 %v251
        %v300 = vunpack.c.l.b16 %v252
        %v301 = vunpack.c.l.b16 %v253
        %v302 = vunpack.c.l.b16 %v254
        %v303 = vunpack.c.l.b16 %v255
        %v304 = vunpack.c.l.b16 %v256
        %v305 = vunpack.c.l.b16 %v257
        %v306 = vunpack.c.l.b16 %v258
        %v307 = vunpack.c.l.b16 %v259
        %v308 = vunpack.c.l.b16 %v260
        %v309 = vunpack.c.l.b16 %v261
        %v310 = vunpack.c.l.b16 %v262
        %v311 = vunpack.c.l.b16 %v263
        %v312 = vunpack.c.l.b16 %v264
        %v313 = vunpack.c.l.b16 %v265
        %v314 = vpack.c.b16 %v299, %v298
        %v315 = vpack.c.b16 %v301, %v300
        %v316 = vpack.c.b16 %v303, %v302
        %v317 = vpack.c.b16 %v305, %v304
        %v318 = vpack.c.b16 %v307, %v306
        %v319 = vpack.c.b16 %v309, %v308
        %v320 = vpack.c.b16 %v311, %v310
        %v321 = vpack.c.b16 %v313, %v312
        %330 = vmatprep.subr.bf16.mxu0 0
        %331 = vmatpush1.bf16.msra.mxu0 %v314
        %332 = vmatprep.subr.bf16.mxu0 0
        %333 = vmatpush1.bf16.msra.mxu0 %v315
        %334 = vmatprep.subr.bf16.mxu0 0
        %335 = vmatpush1.bf16.msra.mxu0 %v316
        %336 = vmatprep.subr.bf16.mxu0 0
        %337 = vmatpush1.bf16.msra.mxu0 %v317
        %338 = vmatprep.subr.bf16.mxu0 0
        %339 = vmatpush1.bf16.msra.mxu0 %v318
        %340 = vmatprep.subr.bf16.mxu0 0
        %341 = vmatpush1.bf16.msra.mxu0 %v319
        %342 = vmatprep.subr.bf16.mxu0 0
        %343 = vmatpush1.bf16.msra.mxu0 %v320
        %344 = vmatprep.subr.bf16.mxu0 0
        %345 = vmatpush1.bf16.msra.mxu0 %v321
        %346 = vmatprep.subr.bf16.mxu0 0
        %347 = vmatpush1.bf16.msra.mxu0 0
        %348 = vmatprep.subr.bf16.mxu0 0
        %349 = vmatpush1.bf16.msra.mxu0 0
        %350 = vmatprep.subr.bf16.mxu0 0
        %351 = vmatpush1.bf16.msra.mxu0 0
        %352 = vmatprep.subr.bf16.mxu0 0
        %353 = vmatpush1.bf16.msra.mxu0 0
        %354 = vmatprep.subr.bf16.mxu0 0
        %355 = vmatpush1.bf16.msra.mxu0 0
        %356 = vmatprep.subr.bf16.mxu0 0
        %357 = vmatpush1.bf16.msra.mxu0 0
        %358 = vmatprep.subr.bf16.mxu0 0
        %359 = vmatpush1.bf16.msra.mxu0 0
        %360 = vmatprep.subr.bf16.mxu0 0
        %361 = vmatpush1.bf16.msra.mxu0 0
        %362 = vmatprep.mubr.bf16.mxu0 0
        %363 = vmatmul.mubr.bf16.gmra.mrb[0].mxu0 %v278
        %v364 = vpop.f32.mrb[0].mxu0
        %v365 = vadd.f32 %v266, %v364
        %v366 = vpop.f32.mrb[0].mxu0
        %v367 = vpop.f32.mrb[0].mxu0
        %v368 = vadd.f32 %v267, %v367
        %v369 = vpop.f32.mrb[0].mxu0
        %370 = vmatprep.mubr.bf16.mxu0 0
        %371 = vmatmul.mubr.bf16.gmra.mrb[0].mxu0 %v279
        %v372 = vpop.f32.mrb[0].mxu0
        %v373 = vadd.f32 %v268, %v372
        %v374 = vpop.f32.mrb[0].mxu0
        %v375 = vpop.f32.mrb[0].mxu0
        %v376 = vadd.f32 %v269, %v375
        %v377 = vpop.f32.mrb[0].mxu0
        %378 = vdwg.mxu0
        %379 = vst [vmem:[%s239] sm:$0xff] %v365
        %380 = vst [vmem:[%s239 + $0x8] sm:$0xff] %v368
        %381 = vst [vmem:[%s239 + $0x10] sm:$0xff] %v373
        %382 = vst [vmem:[%s239 + $0x18] sm:$0xff] %v376
        %s383 = sand.u32 %s115, 1
        %s384 = sand.u32 %s115, 1
        %s385 = smul.addr %s384, 32
        %s386 = scalar_lea.vmem [#allocation7], %s385
        // Predicated region
        $region45: #{tpu_custom_call.1} parent=31 // pred_check
          %p387 = pneg %p125
        $region46: #{tpu_custom_call.1} parent=31 // pred_check_branch
          %389 = sbr.rel (%p387) target = $region48
        $region47: #{tpu_custom_call.1} parent=31 // pred_region
          %s390 = smul.u32 4, %s22
          %s391 = ssub.s32 3, %s390
          %s392 = smul.u32 128, %s391
          %p393 = scmp.ne.s32.totalorder 0, %s392
          %s394 = smul.addr %s23, 3
          %s395 = sadd.s32 %s390, %s394
          %s396 = smul.addr %s395, 8
          %s397 = scalar_lea.vmem %s3, %s396
          // Predicated region
          $region49: #{tpu_custom_call.1} parent=47 // pred_check
            %p398 = pneg %p393
          $region50: #{tpu_custom_call.1} parent=47 // pred_check_branch
            %400 = sbr.rel (%p398) target = $region52
          $region51: #{tpu_custom_call.1} parent=47 // pred_region
            // Predicated region
            $region53: #{tpu_custom_call.1} parent=51 // pred_check
              _
            $region54: #{tpu_custom_call.1} parent=51 // pred_check_branch
              %402 = sbr.rel (0) target = $region56
            $region55: #{tpu_custom_call.1} parent=51 // pred_region
              // Predicated region
              $region75: #{tpu_custom_call.1} parent=55 // pred_check
                _
              $region76: #{tpu_custom_call.1} parent=55 // pred_check_branch
                %456 = sbr.rel (0) target = $region78
              $region77: #{tpu_custom_call.1} parent=55 // pred_region
                %s457 = sdiv.u32.pop %s391, 3
                %s458 = srem.u32.pop %s391, 3
                // While loop
                $region79: #{tpu_custom_call.1} parent=77 // loop_pre_header
                  _
                $region80: #{tpu_custom_call.1} parent=77 // loop_header
                  %s460 = sphi 0, %s462
                  %p461 = scmp.ge.s32.totalorder %s460, %s457
                  %s465 = sphi 0, %s476
                  %s466 = sphi %s386, %s479
                  %s467 = sphi %s397, %s480
                $region81: #{tpu_custom_call.1} parent=77 // loop_header_branch
                  %464 = sbr.rel (%p461) target = $region85
                $region82: #{tpu_custom_call.1} parent=77 // loop_body
                  %v468 = vld [vmem:[%s466] sm:$0xff]
                  %469 = vst [vmem:[%s467] sm:$0xff] %v468
                  %v470 = vld [vmem:[%s466 + $0x8] sm:$0xff]
                  %471 = vst [vmem:[%s467 + $0x8] sm:$0xff] %v470
                  %v472 = vld [vmem:[%s466 + $0x10] sm:$0xff]
                  %473 = vst [vmem:[%s467 + $0x10] sm:$0xff] %v472
                  %s474 = sadd.s32 1, %s465
                  %p475 = scmp.ge.s32.totalorder %s474, %s457
                  %s476 = scalar_select %p475, 0, %s474
                  %s477 = smul.u32 %s476, 24
                  %s478 = smul.u32 %s476, 24
                  %s479 = scalar_lea.vmem %s386, %s477 [#allocation7]
                  %s480 = scalar_lea.vmem %s397, %s478
                $region83: #{tpu_custom_call.1} parent=77 // loop_footer
                  %s462 = sadd.s32 %s460, 1
                $region84: #{tpu_custom_call.1} parent=77 // loop_footer_branch
                  %459 = sbr.rel target = $region80
                $region85: #{tpu_custom_call.1} parent=77 // loop_exit
                  _
                %s481 = sdiv.u32.pop %s391, 3
                %s482 = srem.u32.pop %s391, 3
                %s483 = smul.u32 %s481, 3
                %s484 = smul.u32 8, %s483
                %s485 = scalar_lea.vmem %s386, %s484 [#allocation7]
                %s486 = smul.u32 8, %s483
                %s487 = scalar_lea.vmem %s397, %s486
                // While loop
                $region86: #{tpu_custom_call.1} parent=77 // loop_pre_header
                  _
                $region87: #{tpu_custom_call.1} parent=77 // loop_header
                  %s489 = sphi 0, %s491
                  %p490 = scmp.ge.s32.totalorder %s489, %s482
                  %s494 = sphi 0, %s501
                  %s495 = sphi %s485, %s504
                  %s496 = sphi %s487, %s505
                $region88: #{tpu_custom_call.1} parent=77 // loop_header_branch
                  %493 = sbr.rel (%p490) target = $region92
                $region89: #{tpu_custom_call.1} parent=77 // loop_body
                  %v497 = vld [vmem:[%s495] sm:$0xff]
                  %498 = vst [vmem:[%s496] sm:$0xff] %v497
                  %s499 = sadd.s32 1, %s494
                  %p500 = scmp.ge.s32.totalorder %s499, %s482
                  %s501 = scalar_select %p500, 0, %s499
                  %s502 = smul.u32 %s501, 8
                  %s503 = smul.u32 %s501, 8
                  %s504 = scalar_lea.vmem %s485, %s502 [#allocation7]
                  %s505 = scalar_lea.vmem %s487, %s503
                $region90: #{tpu_custom_call.1} parent=77 // loop_footer
                  %s491 = sadd.s32 %s489, 1
                $region91: #{tpu_custom_call.1} parent=77 // loop_footer_branch
                  %488 = sbr.rel target = $region87
                $region92: #{tpu_custom_call.1} parent=77 // loop_exit
                  _
              $region78: #{tpu_custom_call.1} parent=55 // pred_fallthru
                _
              // Predicated region
              $region93: #{tpu_custom_call.1} parent=55 // pred_check
                _
              $region94: #{tpu_custom_call.1} parent=55 // pred_check_branch
                %507 = sbr.rel target = $region96
              $region95: #{tpu_custom_call.1} parent=55 // pred_region
                _
              $region96: #{tpu_custom_call.1} parent=55 // pred_fallthru
                _
            $region56: #{tpu_custom_call.1} parent=51 // pred_fallthru
              _
            // Predicated region
            $region57: #{tpu_custom_call.1} parent=51 // pred_check
              _
            $region58: #{tpu_custom_call.1} parent=51 // pred_check_branch
              %404 = sbr.rel target = $region60
            $region59: #{tpu_custom_call.1} parent=51 // pred_region
              %s406 = sdiv.u32.pop %s391, 3
              %s407 = srem.u32.pop %s391, 3
              // While loop
              $region61: #{tpu_custom_call.1} parent=59 // loop_pre_header
                _
              $region62: #{tpu_custom_call.1} parent=59 // loop_header
                %s409 = sphi 0, %s411
                %p410 = scmp.ge.s32.totalorder %s409, %s406
                %s414 = sphi 0, %s425
                %s415 = sphi %s386, %s428
                %s416 = sphi %s397, %s429
              $region63: #{tpu_custom_call.1} parent=59 // loop_header_branch
                %413 = sbr.rel (%p410) target = $region67
              $region64: #{tpu_custom_call.1} parent=59 // loop_body
                %v417 = vld [vmem:[%s415] sm:$0xff]
                %418 = vst [vmem:[%s416] sm:$0xff] %v417
                %v419 = vld [vmem:[%s415 + $0x8] sm:$0xff]
                %420 = vst [vmem:[%s416 + $0x8] sm:$0xff] %v419
                %v421 = vld [vmem:[%s415 + $0x10] sm:$0xff]
                %422 = vst [vmem:[%s416 + $0x10] sm:$0xff] %v421
                %s423 = sadd.s32 1, %s414
                %p424 = scmp.ge.s32.totalorder %s423, %s406
                %s425 = scalar_select %p424, 0, %s423
                %s426 = smul.u32 %s425, 24
                %s427 = smul.u32 %s425, 24
                %s428 = scalar_lea.vmem %s386, %s426 [#allocation7]
                %s429 = scalar_lea.vmem %s397, %s427
              $region65: #{tpu_custom_call.1} parent=59 // loop_footer
                %s411 = sadd.s32 %s409, 1
              $region66: #{tpu_custom_call.1} parent=59 // loop_footer_branch
                %408 = sbr.rel target = $region62
              $region67: #{tpu_custom_call.1} parent=59 // loop_exit
                _
              %s430 = sdiv.u32.pop %s391, 3
              %s431 = srem.u32.pop %s391, 3
              %s432 = smul.u32 %s430, 3
              %s433 = smul.u32 8, %s432
              %s434 = scalar_lea.vmem %s386, %s433 [#allocation7]
              %s435 = smul.u32 8, %s432
              %s436 = scalar_lea.vmem %s397, %s435
              // While loop
              $region68: #{tpu_custom_call.1} parent=59 // loop_pre_header
                _
              $region69: #{tpu_custom_call.1} parent=59 // loop_header
                %s438 = sphi 0, %s440
                %p439 = scmp.ge.s32.totalorder %s438, %s431
                %s443 = sphi 0, %s450
                %s444 = sphi %s434, %s453
                %s445 = sphi %s436, %s454
              $region70: #{tpu_custom_call.1} parent=59 // loop_header_branch
                %442 = sbr.rel (%p439) target = $region74
              $region71: #{tpu_custom_call.1} parent=59 // loop_body
                %v446 = vld [vmem:[%s444] sm:$0xff]
                %447 = vst [vmem:[%s445] sm:$0xff] %v446
                %s448 = sadd.s32 1, %s443
                %p449 = scmp.ge.s32.totalorder %s448, %s431
                %s450 = scalar_select %p449, 0, %s448
                %s451 = smul.u32 %s450, 8
                %s452 = smul.u32 %s450, 8
                %s453 = scalar_lea.vmem %s434, %s451 [#allocation7]
                %s454 = scalar_lea.vmem %s436, %s452
              $region72: #{tpu_custom_call.1} parent=59 // loop_footer
                %s440 = sadd.s32 %s438, 1
              $region73: #{tpu_custom_call.1} parent=59 // loop_footer_branch
                %437 = sbr.rel target = $region69
              $region74: #{tpu_custom_call.1} parent=59 // loop_exit
                _
            $region60: #{tpu_custom_call.1} parent=51 // pred_fallthru
              _
          $region52: #{tpu_custom_call.1} parent=47 // pred_fallthru
            _
          %508 = vnop
        $region48: #{tpu_custom_call.1} parent=31 // pred_fallthru
          _
      $region32: #{tpu_custom_call.1} parent=5 // pred_fallthru
        _
      %p509 = scmp.le.s32.totalorder 2, %s13
      // Predicated region
      $region97: #{tpu_custom_call.1} parent=5 // pred_check
        %p510 = pneg %p509
      $region98: #{tpu_custom_call.1} parent=5 // pred_check_branch
        %512 = sbr.rel (%p510) target = $region100
      $region99: #{tpu_custom_call.1} parent=5 // pred_region
        %s513 = ssub.s32 %s13, 2
        // Predicated region
        $region101: #{tpu_custom_call.1} parent=99 // pred_check
          %p514 = pneg %p131
        $region102: #{tpu_custom_call.1} parent=99 // pred_check_branch
          %516 = sbr.rel (%p514) target = $region104
        $region103: #{tpu_custom_call.1} parent=99 // pred_region
          %s517 = sand.u32 %s116, 1
          %s518 = sand.u32 %s116, 1
          %s519 = smul.addr %s518, 32
          %s520 = scalar_lea.vmem [#allocation7], %s519
        $region104: #{tpu_custom_call.1} parent=99 // pred_fallthru
          _
      $region100: #{tpu_custom_call.1} parent=5 // pred_fallthru
        _
    $region6: #{tpu_custom_call.1} parent=1 // loop_footer
      %s17 = sadd.s32 1, %s13
    $region7: #{tpu_custom_call.1} parent=1 // loop_footer_branch
      %12 = sbr.rel target = $region3
    $region8: #{tpu_custom_call.1} parent=1 // loop_exit
      _
    %521 = vsyncpa [#allocation3], 1
    %s522 = scalar_lea.sflag [#allocation3], 1
    %523 = vsyncpa %s522, 1
    %524 = vsyncpa [#allocation5], 1

// kernel: tpu_custom_call.1
$region0: #{tpu_custom_call.1}
  #allocation0 [shape = 'u32[]', space=smem, size = 0x4, offset = 0x4, fixed_abs, tag = 'smem constant byte address 0x4 - core index']
  #allocation1 [shape = 'u32[144,128]{1,0:T(1,128)}', space=vmem, size = 0x12000, scoped, tag = 'internal scratch']
  %s0 = inlined_call_operand.hbm [shape: bf16[2,32,128], index: 0, kind: input, shape index: {}]
  %s1 = inlined_call_operand.hbm [shape: bf16[128,128], index: 1, kind: input, shape index: {}]
  %s2 = inlined_call_operand.hbm [shape: f32[32,128], index: 2, kind: input, shape index: {}]
  %s3 = inlined_call_operand.vmem [shape: f32[2,17,128], index: 3, kind: output, shape index: {}]
  %s4 = sld [smem:[#allocation0]]
  $region105: #{tpu_custom_call.1} parent=0
    _
  %s6 = ssub.s32 1, %s4
  %s7 = scalar_select 0, %s6, %s4
  $region1: #{tpu_custom_call.1} parent=0
    #allocation2 [shape = 'u8[16384]{0}', space=vmem, size = 0x4000, scoped, tag = 'input window, operand 0']
    #allocation3 [shape = 's32[2]{0}', space=sflag, size = 0x8, scoped, tag = 'scoped memory for tpu_custom_call.1']
    #allocation4 [shape = 'u8[32768]{0}', space=vmem, size = 0x8000, scoped, tag = 'input window, operand 1, single buffered']
    #allocation5 [shape = 's32[1]{0}', space=sflag, size = 0x4, scoped, tag = 'scoped memory for tpu_custom_call.1']
    #allocation6 [shape = 'u8[16384]{0}', space=vmem, size = 0x4000, scoped, tag = 'input window, operand 2, single buffered']
    #allocation7 [shape = 'u8[32768]{0}', space=vmem, size = 0x8000, scoped, tag = 'output window, operand 0']
    %8 = vsyncpa [#allocation3], 0
    %s9 = scalar_lea.sflag [#allocation3], 1
    %10 = vsyncpa %s9, 0
    %11 = vsyncpa [#allocation5], 0
    loop: start=0, step=1, limit=4
    $region2: #{tpu_custom_call.1} parent=1 // loop_pre_header
      _
    $region3: #{tpu_custom_call.1} parent=1 // loop_header
      %s13 = sphi 0, %s17
      %p14 = scmp.ge.s32.totalorder %s13, 4
      %s20 = sphi 0, %s32
      %s21 = sphi 0, %s28
      %s22 = sphi 0, %s20
      %s23 = sphi 0, %s21
      %s24 = sphi 0, %s22
      %s25 = sphi 0, %s23
      %s37 = sphi 0, %s39
      %s40 = sphi 0, %s37
      %s41 = sphi 0, %s40
      %s57 = sphi 0, %s41
      %s61 = sphi 0, %s61
      %s63 = sphi 0, %s61
      %s64 = sphi 0, %s63
      %s78 = sphi 0, %s64
      %s84 = sphi 0, %s86
      %s87 = sphi 0, %s84
      %s88 = sphi 0, %s87
      %s104 = sphi 0, %s88
      %s112 = sphi 0, %s114
      %s115 = sphi 0, %s112
      %s116 = sphi 0, %s115
      %s132 = sphi 0, %s116
    $region4: #{tpu_custom_call.1} parent=1 // loop_header_branch
      %16 = sbr.rel (%p14) target = $region8
    $region5: #{tpu_custom_call.1} parent=1 // loop_body
      %s18 = ssub.s32 %s13, 1
      %s19 = ssub.s32 %s13, 2
      %s26 = sadd.s32 1, %s21
      %p27 = scmp.ge.s32.totalorder %s26, 2
      %s28 = scalar_select %p27, 0, %s26
      %s29 = sadd.s32 1, %s20
      %s30 = scalar_select %p27, %s29, %s20
      %p31 = scmp.ge.s32.totalorder %s30, 1
      %s32 = scalar_select %p31, 0, %s30
      %s33 = ssub.s32 %s21, %s28
      %s34 = ssub.s32 %s20, %s32
      %s35 = sor.u32 %s33, %s34
      %p36 = scmp.eq.s32.totalorder %s35, 0
      %s38 = sadd.s32 %s37, 1
      %s39 = scalar_select %p36, %s37, %s38
      %p42 = pneg %p36
      %p43 = scmp.eq.s32.totalorder %s13, 1
      %p44 = por %p42, %p43
      %p45 = scmp.ne.s32.totalorder %s37, %s40
      %p46 = scmp.eq.s32.totalorder %s13, 0
      %p47 = por %p45, %p46
      %p48 = scmp.ne.s32.totalorder %s37, %s40
      %p49 = scmp.eq.s32.totalorder %s18, 1
      %p50 = por %p48, %p49
      %p51 = scmp.ne.s32.totalorder %s40, %s41
      %p52 = scmp.eq.s32.totalorder %s18, 0
      %p53 = por %p51, %p52
      %p54 = scmp.ne.s32.totalorder %s40, %s41
      %p55 = scmp.eq.s32.totalorder %s19, 1
      %p56 = por %p54, %p55
      %p58 = scmp.ne.s32.totalorder %s41, %s57
      %p59 = scmp.eq.s32.totalorder %s19, 0
      %p60 = por %p58, %p59
      %s62 = sadd.s32 %s61, 1
      %p65 = scmp.eq.s32.totalorder %s13, 1
      %p66 = scmp.ne.s32.totalorder %s61, %s63
      %p67 = scmp.eq.s32.totalorder %s13, 0
      %p68 = por %p66, %p67
      %p69 = scmp.ne.s32.totalorder %s61, %s63
      %p70 = scmp.eq.s32.totalorder %s18, 1
      %p71 = por %p69, %p70
      %p72 = scmp.ne.s32.totalorder %s63, %s64
      %p73 = scmp.eq.s32.totalorder %s18, 0
      %p74 = por %p72, %p73
      %p75 = scmp.ne.s32.totalorder %s63, %s64
      %p76 = scmp.eq.s32.totalorder %s19, 1
      %p77 = por %p75, %p76
      %p79 = scmp.ne.s32.totalorder %s64, %s78
      %p80 = scmp.eq.s32.totalorder %s19, 0
      %p81 = por %p79, %p80
      %s82 = ssub.s32 %s20, %s32
      %p83 = scmp.eq.s32.totalorder %s82, 0
      %s85 = sadd.s32 %s84, 1
      %s86 = scalar_select %p83, %s84, %s85
      %p89 = pneg %p83
      %p90 = scmp.eq.s32.totalorder %s13, 1
      %p91 = por %p89, %p90
      %p92 = scmp.ne.s32.totalorder %s84, %s87
      %p93 = scmp.eq.s32.totalorder %s13, 0
      %p94 = por %p92, %p93
      %p95 = scmp.ne.s32.totalorder %s84, %s87
      %p96 = scmp.eq.s32.totalorder %s18, 1
      %p97 = por %p95, %p96
      %p98 = scmp.ne.s32.totalorder %s87, %s88
      %p99 = scmp.eq.s32.totalorder %s18, 0
      %p100 = por %p98, %p99
      %p101 = scmp.ne.s32.totalorder %s87, %s88
      %p102 = scmp.eq.s32.totalorder %s19, 1
      %p103 = por %p101, %p102
      %p105 = scmp.ne.s32.totalorder %s88, %s104
      %p106 = scmp.eq.s32.totalorder %s19, 0
      %p107 = por %p105, %p106
      %s108 = ssub.s32 %s21, %s28
      %s109 = ssub.s32 %s20, %s32
      %s110 = sor.u32 %s108, %s109
      %p111 = scmp.eq.s32.totalorder %s110, 0
      %s113 = sadd.s32 %s112, 1
      %s114 = scalar_select %p111, %s112, %s113
      %p117 = pneg %p111
      %p118 = scmp.eq.s32.totalorder %s13, 1
      %p119 = por %p117, %p118
      %p120 = scmp.ne.s32.totalorder %s112, %s115
      %p121 = scmp.eq.s32.totalorder %s13, 0
      %p122 = por %p120, %p121
      %p123 = scmp.ne.s32.totalorder %s112, %s115
      %p124 = scmp.eq.s32.totalorder %s18, 1
      %p125 = por %p123, %p124
      %p126 = scmp.ne.s32.totalorder %s115, %s116
      %p127 = scmp.eq.s32.totalorder %s18, 0
      %p128 = por %p126, %p127
      %p129 = scmp.ne.s32.totalorder %s115, %s116
      %p130 = scmp.eq.s32.totalorder %s19, 1
      %p131 = por %p129, %p130
      %p133 = scmp.ne.s32.totalorder %s116, %s132
      %p134 = scmp.eq.s32.totalorder %s19, 0
      %p135 = por %p133, %p134
      %p136 = scmp.le.s32.totalorder 1, %s13
      %p137 = scmp.lt.s32.totalorder %s13, 3
      %p138 = pnand %p136, %p137
      %p139 = pneg %p138
      // Predicated region
      $region9: #{tpu_custom_call.1} parent=5 // pred_check
        _
      $region10: #{tpu_custom_call.1} parent=5 // pred_check_branch
        %141 = sbr.rel (%p138) target = $region12
      $region11: #{tpu_custom_call.1} parent=5 // pred_region
        %s142 = ssub.s32 %s13, 1
        // Predicated region
        $region13: #{tpu_custom_call.1} parent=11 // pred_check
          %p143 = pneg %p74
        $region14: #{tpu_custom_call.1} parent=11 // pred_check_branch
          %145 = sbr.rel (%p143) target = $region16
        $region15: #{tpu_custom_call.1} parent=11 // pred_region
          %s147 = ssub.s32 1024, 1024
          %148 = vsyncadd [#allocation5], %s147
          %s149 = sshll.u32 [#allocation4], 4
          %s150 = int_to_ptr.vmem [resolvable:$true] %s149
          %155 = dma.hbm_to_vmem [thread:$0]  %s1, 1024, %s150, [#allocation5], 64, 64, 4
        $region16: #{tpu_custom_call.1} parent=11 // pred_fallthru
          _
        // Predicated region
        $region17: #{tpu_custom_call.1} parent=11 // pred_check
          %p156 = pneg %p100
        $region18: #{tpu_custom_call.1} parent=11 // pred_check_branch
          %158 = sbr.rel (%p156) target = $region20
        $region19: #{tpu_custom_call.1} parent=11 // pred_region
          %s159 = smul.u32 4, %s22
          %s161 = ssub.s32 512, 512
          %162 = vsyncadd [#allocation5], %s161
          %s163 = smul.addr %s159, 128
          %s164 = scalar_lea.hbm %s2, %s163
          %s165 = sshll.u32 [#allocation6], 4
          %s166 = int_to_ptr.vmem [resolvable:$true] %s165
          %171 = dma.hbm_to_vmem [thread:$0]  %s164, 512, %s166, [#allocation5], 128, 128, 8
        $region20: #{tpu_custom_call.1} parent=11 // pred_fallthru
          _
      $region12: #{tpu_custom_call.1} parent=5 // pred_fallthru
        _
      %p172 = scmp.lt.s32.totalorder %s13, 2
      // Predicated region
      $region21: #{tpu_custom_call.1} parent=5 // pred_check
        %p173 = pneg %p172
      $region22: #{tpu_custom_call.1} parent=5 // pred_check_branch
        %175 = sbr.rel (%p173) target = $region24
      $region23: #{tpu_custom_call.1} parent=5 // pred_region
        // Predicated region
        $region25: #{tpu_custom_call.1} parent=23 // pred_check
          %p176 = pneg %p47
        $region26: #{tpu_custom_call.1} parent=23 // pred_check_branch
          %178 = sbr.rel (%p176) target = $region28
        $region27: #{tpu_custom_call.1} parent=23 // pred_region
          %s179 = sand.u32 %s37, 1
          %s180 = scalar_lea.sflag [#allocation3], %s179
          %s181 = sand.u32 %s37, 1
          %s182 = smul.addr %s181, 16
          %s183 = scalar_lea.vmem [#allocation2], %s182
          %s184 = smul.u32 4, %s20
          %s186 = ssub.s32 256, 256
          %187 = vsyncadd %s180, %s186
          %s188 = smul.addr %s21, 4
          %s189 = sadd.s32 %s184, %s188
          %s190 = smul.addr %s189, 64
          %s191 = scalar_lea.hbm %s0, %s190
          %s192 = sshll.u32 %s183, 4
          %s193 = int_to_ptr.vmem [resolvable:$true] %s192
          %198 = dma.hbm_to_vmem [thread:$0]  %s191, 256, %s193, %s180, 64, 64, 4
        $region28: #{tpu_custom_call.1} parent=23 // pred_fallthru
          _
      $region24: #{tpu_custom_call.1} parent=5 // pred_fallthru
        _
      %p199 = scmp.le.s32.totalorder 1, %s13
      %p200 = scmp.lt.s32.totalorder %s13, 3
      %p201 = pnand %p199, %p200
      %p202 = pneg %p201
      // Predicated region
      $region29: #{tpu_custom_call.1} parent=5 // pred_check
        _
      $region30: #{tpu_custom_call.1} parent=5 // pred_check_branch
        %204 = sbr.rel (%p201) target = $region32
      $region31: #{tpu_custom_call.1} parent=5 // pred_region
        %s205 = ssub.s32 %s13, 1
        %s206 = sand.u32 %s40, 1
        %s207 = scalar_lea.sflag [#allocation3], %s206
        %s208 = sand.u32 %s40, 1
        %s209 = smul.addr %s208, 16
        %s210 = scalar_lea.vmem [#allocation2], %s209
        // Predicated region
        $region33: #{tpu_custom_call.1} parent=31 // pred_check
          %p211 = pneg %p53
        $region34: #{tpu_custom_call.1} parent=31 // pred_check_branch
          %213 = sbr.rel (%p211) target = $region36
        $region35: #{tpu_custom_call.1} parent=31 // pred_region
          %214 = dma.done %s207, 256
        $region36: #{tpu_custom_call.1} parent=31 // pred_fallthru
          _
        // Predicated region
        $region37: #{tpu_custom_call.1} parent=31 // pred_check
          %p215 = pneg %p74
        $region38: #{tpu_custom_call.1} parent=31 // pred_check_branch
          %217 = sbr.rel (%p215) target = $region40
        $region39: #{tpu_custom_call.1} parent=31 // pred_region
          %218 = dma.done [#allocation5], 1024
        $region40: #{tpu_custom_call.1} parent=31 // pred_fallthru
          _
        // Predicated region
        $region41: #{tpu_custom_call.1} parent=31 // pred_check
          %p219 = pneg %p100
        $region42: #{tpu_custom_call.1} parent=31 // pred_check_branch
          %221 = sbr.rel (%p219) target = $region44
        $region43: #{tpu_custom_call.1} parent=31 // pred_region
          %222 = dma.done [#allocation5], 512
        $region44: #{tpu_custom_call.1} parent=31 // pred_fallthru
          _
        %s223 = sand.u32 %s40, 1
        %s224 = scalar_lea.sflag [#allocation3], %s223
        %s225 = sand.u32 %s40, 1
        %s226 = smul.addr %s225, 16
        %s227 = scalar_lea.vmem [#allocation2], %s226
        %p228 = pneg %p53
        %p229 = pneg %p50
        %p230 = pneg %p74
        %p231 = pneg %p71
        %p232 = pneg %p100
        %p233 = pneg %p97
        %p234 = pneg %p128
        %p235 = pneg %p125
        %s236 = sand.u32 %s115, 1
        %s237 = sand.u32 %s115, 1
        %s238 = smul.addr %s237, 32
        %s239 = scalar_lea.vmem [#allocation7], %s238
        %s240 = smul.u32 4, %s22
        %s241 = smul.u32 4, %s22
        %s242 = smul.u32 4, %s22
        %s243 = ssub.s32 3, %s242
        %s244 = smul.u32 128, %s243
        %v246 = vld [vmem:[%s210] sm:$0xf]
        %v247 = vld [vmem:[%s210 + $0x4] sm:$0xf]
        %v248 = vld [vmem:[%s210 + $0x8] sm:$0xf]
        %v249 = vld [vmem:[%s210 + $0xc] sm:$0xf]
        %v250 = vld [vmem:[#allocation4] sm:$0xf]
        %v251 = vld [vmem:[#allocation4 + $0x4] sm:$0xf]
        %v252 = vld [vmem:[#allocation4 + $0x8] sm:$0xf]
        %v253 = vld [vmem:[#allocation4 + $0xc] sm:$0xf]
        %v254 = vld [vmem:[#allocation4 + $0x10] sm:$0xf]
        %v255 = vld [vmem:[#allocation4 + $0x14] sm:$0xf]
        %v256 = vld [vmem:[#allocation4 + $0x18] sm:$0xf]
        %v257 = vld [vmem:[#allocation4 + $0x1c] sm:$0xf]
        %v258 = vld [vmem:[#allocation4 + $0x20] sm:$0xf]
        %v259 = vld [vmem:[#allocation4 + $0x24] sm:$0xf]
        %v260 = vld [vmem:[#allocation4 + $0x28] sm:$0xf]
        %v261 = vld [vmem:[#allocation4 + $0x2c] sm:$0xf]
        %v262 = vld [vmem:[#allocation4 + $0x30] sm:$0xf]
        %v263 = vld [vmem:[#allocation4 + $0x34] sm:$0xf]
        %v264 = vld [vmem:[#allocation4 + $0x38] sm:$0xf]
        %v265 = vld [vmem:[#allocation4 + $0x3c] sm:$0xf]
        %v266 = vld [vmem:[#allocation6] sm:$0xff]
        %v267 = vld [vmem:[#allocation6 + $0x8] sm:$0xff]
        %v268 = vld [vmem:[#allocation6 + $0x10] sm:$0xff]
        %v269 = vld [vmem:[#allocation6 + $0x18] sm:$0xff]
        %v274 = vunpack.c.l.b16 %v246
        %v275 = vunpack.c.l.b16 %v247
        %v276 = vunpack.c.l.b16 %v248
        %v277 = vunpack.c.l.b16 %v249
        %v278 = vpack.c.b16 %v275, %v274
        %v279 = vpack.c.b16 %v277, %v276
        %v298 = vunpack.c.l.b16 %v250
        %v299 = vunpack.c.l.b16 %v251
        %v300 = vunpack.c.l.b16 %v252
        %v301 = vunpack.c.l.b16 %v253
        %v302 = vunpack.c.l.b16 %v254
        %v303 = vunpack.c.l.b16 %v255
        %v304 = vunpack.c.l.b16 %v256
        %v305 = vunpack.c.l.b16 %v257
        %v306 = vunpack.c.l.b16 %v258
        %v307 = vunpack.c.l.b16 %v259
        %v308 = vunpack.c.l.b16 %v260
        %v309 = vunpack.c.l.b16 %v261
        %v310 = vunpack.c.l.b16 %v262
        %v311 = vunpack.c.l.b16 %v263
        %v312 = vunpack.c.l.b16 %v264
        %v313 = vunpack.c.l.b16 %v265
        %v314 = vpack.c.b16 %v299, %v298
        %v315 = vpack.c.b16 %v301, %v300
        %v316 = vpack.c.b16 %v303, %v302
        %v317 = vpack.c.b16 %v305, %v304
        %v318 = vpack.c.b16 %v307, %v306
        %v319 = vpack.c.b16 %v309, %v308
        %v320 = vpack.c.b16 %v311, %v310
        %v321 = vpack.c.b16 %v313, %v312
        %330 = vmatprep.subr.bf16.mxu0 0
        %331 = vmatpush1.bf16.msra.mxu0 %v314
        %332 = vmatprep.subr.bf16.mxu0 0
        %333 = vmatpush1.bf16.msra.mxu0 %v315
        %334 = vmatprep.subr.bf16.mxu0 0
        %335 = vmatpush1.bf16.msra.mxu0 %v316
        %336 = vmatprep.subr.bf16.mxu0 0
        %337 = vmatpush1.bf16.msra.mxu0 %v317
        %338 = vmatprep.subr.bf16.mxu0 0
        %339 = vmatpush1.bf16.msra.mxu0 %v318
        %340 = vmatprep.subr.bf16.mxu0 0
        %341 = vmatpush1.bf16.msra.mxu0 %v319
        %342 = vmatprep.subr.bf16.mxu0 0
        %343 = vmatpush1.bf16.msra.mxu0 %v320
        %344 = vmatprep.subr.bf16.mxu0 0
        %345 = vmatpush1.bf16.msra.mxu0 %v321
        %346 = vmatprep.subr.bf16.mxu0 0
        %347 = vmatpush1.bf16.msra.mxu0 0
        %348 = vmatprep.subr.bf16.mxu0 0
        %349 = vmatpush1.bf16.msra.mxu0 0
        %350 = vmatprep.subr.bf16.mxu0 0
        %351 = vmatpush1.bf16.msra.mxu0 0
        %352 = vmatprep.subr.bf16.mxu0 0
        %353 = vmatpush1.bf16.msra.mxu0 0
        %354 = vmatprep.subr.bf16.mxu0 0
        %355 = vmatpush1.bf16.msra.mxu0 0
        %356 = vmatprep.subr.bf16.mxu0 0
        %357 = vmatpush1.bf16.msra.mxu0 0
        %358 = vmatprep.subr.bf16.mxu0 0
        %359 = vmatpush1.bf16.msra.mxu0 0
        %360 = vmatprep.subr.bf16.mxu0 0
        %361 = vmatpush1.bf16.msra.mxu0 0
        %362 = vmatprep.mubr.bf16.mxu0 0
        %363 = vmatmul.mubr.bf16.gmra.mrb[0].mxu0 %v278
        %v364 = vpop.f32.mrb[0].mxu0
        %v365 = vadd.f32 %v266, %v364
        %v366 = vpop.f32.mrb[0].mxu0
        %v367 = vpop.f32.mrb[0].mxu0
        %v368 = vadd.f32 %v267, %v367
        %v369 = vpop.f32.mrb[0].mxu0
        %370 = vmatprep.mubr.bf16.mxu0 0
        %371 = vmatmul.mubr.bf16.gmra.mrb[0].mxu0 %v279
        %v372 = vpop.f32.mrb[0].mxu0
        %v373 = vadd.f32 %v268, %v372
        %v374 = vpop.f32.mrb[0].mxu0
        %v375 = vpop.f32.mrb[0].mxu0
        %v376 = vadd.f32 %v269, %v375
        %v377 = vpop.f32.mrb[0].mxu0
        %378 = vdwg.mxu0
        %379 = vst [vmem:[%s239] sm:$0xff] %v365
        %380 = vst [vmem:[%s239 + $0x8] sm:$0xff] %v368
        %381 = vst [vmem:[%s239 + $0x10] sm:$0xff] %v373
        %382 = vst [vmem:[%s239 + $0x18] sm:$0xff] %v376
        %s383 = sand.u32 %s115, 1
        %s384 = sand.u32 %s115, 1
        %s385 = smul.addr %s384, 32
        %s386 = scalar_lea.vmem [#allocation7], %s385
        // Predicated region
        $region45: #{tpu_custom_call.1} parent=31 // pred_check
          %p387 = pneg %p125
        $region46: #{tpu_custom_call.1} parent=31 // pred_check_branch
          %389 = sbr.rel (%p387) target = $region48
        $region47: #{tpu_custom_call.1} parent=31 // pred_region
          %s390 = smul.u32 4, %s22
          %s391 = ssub.s32 3, %s390
          %s392 = smul.u32 128, %s391
          %p393 = scmp.ne.s32.totalorder 0, %s392
          %s394 = smul.addr %s23, 3
          %s395 = sadd.s32 %s390, %s394
          %s396 = smul.addr %s395, 8
          %s397 = scalar_lea.vmem %s3, %s396
          // Predicated region
          $region49: #{tpu_custom_call.1} parent=47 // pred_check
            %p398 = pneg %p393
          $region50: #{tpu_custom_call.1} parent=47 // pred_check_branch
            %400 = sbr.rel (%p398) target = $region52
          $region51: #{tpu_custom_call.1} parent=47 // pred_region
            // Predicated region
            $region53: #{tpu_custom_call.1} parent=51 // pred_check
              _
            $region54: #{tpu_custom_call.1} parent=51 // pred_check_branch
              %402 = sbr.rel (0) target = $region56
            $region55: #{tpu_custom_call.1} parent=51 // pred_region
              // Predicated region
              $region75: #{tpu_custom_call.1} parent=55 // pred_check
                _
              $region76: #{tpu_custom_call.1} parent=55 // pred_check_branch
                %456 = sbr.rel (0) target = $region78
              $region77: #{tpu_custom_call.1} parent=55 // pred_region
                %s457 = sdiv.u32.pop %s391, 3
                %s458 = srem.u32.pop %s391, 3
                // While loop
                $region79: #{tpu_custom_call.1} parent=77 // loop_pre_header
                  _
                $region80: #{tpu_custom_call.1} parent=77 // loop_header
                  %s460 = sphi 0, %s462
                  %p461 = scmp.ge.s32.totalorder %s460, %s457
                  %s465 = sphi 0, %s476
                  %s466 = sphi %s386, %s479
                  %s467 = sphi %s397, %s480
                $region81: #{tpu_custom_call.1} parent=77 // loop_header_branch
                  %464 = sbr.rel (%p461) target = $region85
                $region82: #{tpu_custom_call.1} parent=77 // loop_body
                  %v468 = vld [vmem:[%s466] sm:$0xff]
                  %469 = vst [vmem:[%s467] sm:$0xff] %v468
                  %v470 = vld [vmem:[%s466 + $0x8] sm:$0xff]
                  %471 = vst [vmem:[%s467 + $0x8] sm:$0xff] %v470
                  %v472 = vld [vmem:[%s466 + $0x10] sm:$0xff]
                  %473 = vst [vmem:[%s467 + $0x10] sm:$0xff] %v472
                  %s474 = sadd.s32 1, %s465
                  %p475 = scmp.ge.s32.totalorder %s474, %s457
                  %s476 = scalar_select %p475, 0, %s474
                  %s477 = smul.u32 %s476, 24
                  %s478 = smul.u32 %s476, 24
                  %s479 = scalar_lea.vmem %s386, %s477 [#allocation7]
                  %s480 = scalar_lea.vmem %s397, %s478
                $region83: #{tpu_custom_call.1} parent=77 // loop_footer
                  %s462 = sadd.s32 %s460, 1
                $region84: #{tpu_custom_call.1} parent=77 // loop_footer_branch
                  %459 = sbr.rel target = $region80
                $region85: #{tpu_custom_call.1} parent=77 // loop_exit
                  _
                %s481 = sdiv.u32.pop %s391, 3
                %s482 = srem.u32.pop %s391, 3
                %s483 = smul.u32 %s481, 3
                %s484 = smul.u32 8, %s483
                %s485 = scalar_lea.vmem %s386, %s484 [#allocation7]
                %s486 = smul.u32 8, %s483
                %s487 = scalar_lea.vmem %s397, %s486
                // While loop
                $region86: #{tpu_custom_call.1} parent=77 // loop_pre_header
                  _
                $region87: #{tpu_custom_call.1} parent=77 // loop_header
                  %s489 = sphi 0, %s491
                  %p490 = scmp.ge.s32.totalorder %s489, %s482
                  %s494 = sphi 0, %s501
                  %s495 = sphi %s485, %s504
                  %s496 = sphi %s487, %s505
                $region88: #{tpu_custom_call.1} parent=77 // loop_header_branch
                  %493 = sbr.rel (%p490) target = $region92
                $region89: #{tpu_custom_call.1} parent=77 // loop_body
                  %v497 = vld [vmem:[%s495] sm:$0xff]
                  %498 = vst [vmem:[%s496] sm:$0xff] %v497
                  %s499 = sadd.s32 1, %s494
                  %p500 = scmp.ge.s32.totalorder %s499, %s482
                  %s501 = scalar_select %p500, 0, %s499
                  %s502 = smul.u32 %s501, 8
                  %s503 = smul.u32 %s501, 8
                  %s504 = scalar_lea.vmem %s485, %s502 [#allocation7]
                  %s505 = scalar_lea.vmem %s487, %s503
                $region90: #{tpu_custom_call.1} parent=77 // loop_footer
                  %s491 = sadd.s32 %s489, 1
                $region91: #{tpu_custom_call.1} parent=77 // loop_footer_branch
                  %488 = sbr.rel target = $region87
                $region92: #{tpu_custom_call.1} parent=77 // loop_exit
                  _
              $region78: #{tpu_custom_call.1} parent=55 // pred_fallthru
                _
              // Predicated region
              $region93: #{tpu_custom_call.1} parent=55 // pred_check
                _
              $region94: #{tpu_custom_call.1} parent=55 // pred_check_branch
                %507 = sbr.rel target = $region96
              $region95: #{tpu_custom_call.1} parent=55 // pred_region
                _
              $region96: #{tpu_custom_call.1} parent=55 // pred_fallthru
                _
            $region56: #{tpu_custom_call.1} parent=51 // pred_fallthru
              _
            // Predicated region
            $region57: #{tpu_custom_call.1} parent=51 // pred_check
              _
            $region58: #{tpu_custom_call.1} parent=51 // pred_check_branch
              %404 = sbr.rel target = $region60
            $region59: #{tpu_custom_call.1} parent=51 // pred_region
              %s406 = sdiv.u32.pop %s391, 3
              %s407 = srem.u32.pop %s391, 3
              // While loop
              $region61: #{tpu_custom_call.1} parent=59 // loop_pre_header
                _
              $region62: #{tpu_custom_call.1} parent=59 // loop_header
                %s409 = sphi 0, %s411
                %p410 = scmp.ge.s32.totalorder %s409, %s406
                %s414 = sphi 0, %s425
                %s415 = sphi %s386, %s428
                %s416 = sphi %s397, %s429
              $region63: #{tpu_custom_call.1} parent=59 // loop_header_branch
                %413 = sbr.rel (%p410) target = $region67
              $region64: #{tpu_custom_call.1} parent=59 // loop_body
                %v417 = vld [vmem:[%s415] sm:$0xff]
                %418 = vst [vmem:[%s416] sm:$0xff] %v417
                %v419 = vld [vmem:[%s415 + $0x8] sm:$0xff]
                %420 = vst [vmem:[%s416 + $0x8] sm:$0xff] %v419
                %v421 = vld [vmem:[%s415 + $0x10] sm:$0xff]
                %422 = vst [vmem:[%s416 + $0x10] sm:$0xff] %v421
                %s423 = sadd.s32 1, %s414
                %p424 = scmp.ge.s32.totalorder %s423, %s406
                %s425 = scalar_select %p424, 0, %s423
                %s426 = smul.u32 %s425, 24
                %s427 = smul.u32 %s425, 24
                %s428 = scalar_lea.vmem %s386, %s426 [#allocation7]
                %s429 = scalar_lea.vmem %s397, %s427
              $region65: #{tpu_custom_call.1} parent=59 // loop_footer
                %s411 = sadd.s32 %s409, 1
              $region66: #{tpu_custom_call.1} parent=59 // loop_footer_branch
                %408 = sbr.rel target = $region62
              $region67: #{tpu_custom_call.1} parent=59 // loop_exit
                _
              %s430 = sdiv.u32.pop %s391, 3
              %s431 = srem.u32.pop %s391, 3
              %s432 = smul.u32 %s430, 3
              %s433 = smul.u32 8, %s432
              %s434 = scalar_lea.vmem %s386, %s433 [#allocation7]
              %s435 = smul.u32 8, %s432
              %s436 = scalar_lea.vmem %s397, %s435
              // While loop
              $region68: #{tpu_custom_call.1} parent=59 // loop_pre_header
                _
              $region69: #{tpu_custom_call.1} parent=59 // loop_header
                %s438 = sphi 0, %s440
                %p439 = scmp.ge.s32.totalorder %s438, %s431
                %s443 = sphi 0, %s450
                %s444 = sphi %s434, %s453
                %s445 = sphi %s436, %s454
              $region70: #{tpu_custom_call.1} parent=59 // loop_header_branch
                %442 = sbr.rel (%p439) target = $region74
              $region71: #{tpu_custom_call.1} parent=59 // loop_body
                %v446 = vld [vmem:[%s444] sm:$0xff]
                %447 = vst [vmem:[%s445] sm:$0xff] %v446
                %s448 = sadd.s32 1, %s443
                %p449 = scmp.ge.s32.totalorder %s448, %s431
                %s450 = scalar_select %p449, 0, %s448
                %s451 = smul.u32 %s450, 8
                %s452 = smul.u32 %s450, 8
                %s453 = scalar_lea.vmem %s434, %s451 [#allocation7]
                %s454 = scalar_lea.vmem %s436, %s452
              $region72: #{tpu_custom_call.1} parent=59 // loop_footer
                %s440 = sadd.s32 %s438, 1
              $region73: #{tpu_custom_call.1} parent=59 // loop_footer_branch
                %437 = sbr.rel target = $region69
              $region74: #{tpu_custom_call.1} parent=59 // loop_exit
                _
            $region60: #{tpu_custom_call.1} parent=51 // pred_fallthru
              _
          $region52: #{tpu_custom_call.1} parent=47 // pred_fallthru
            _
          %508 = vnop
        $region48: #{tpu_custom_call.1} parent=31 // pred_fallthru
          _
      $region32: #{tpu_custom_call.1} parent=5 // pred_fallthru
        _
      %p509 = scmp.le.s32.totalorder 2, %s13
      // Predicated region
      $region97: #{tpu_custom_call.1} parent=5 // pred_check
        %p510 = pneg %p509
      $region98: #{tpu_custom_call.1} parent=5 // pred_check_branch
        %512 = sbr.rel (%p510) target = $region100
      $region99: #{tpu_custom_call.1} parent=5 // pred_region
        %s513 = ssub.s32 %s13, 2
        // Predicated region
        $region101: #{tpu_custom_call.1} parent=99 // pred_check
          %p514 = pneg %p131
        $region102: #{tpu_custom_call.1} parent=99 // pred_check_branch
          %516 = sbr.rel (%p514) target = $region104
        $region103: #{tpu_custom_call.1} parent=99 // pred_region
          %s517 = sand.u32 %s116, 1
          %s518 = sand.u32 %s116, 1
          %s519 = smul.addr %s518, 32
          %s520 = scalar_lea.vmem [#allocation7], %s519
        $region104: #{tpu_custom_call.1} parent=99 // pred_fallthru
          _
      $region100: #{tpu_custom_call.1} parent=5 // pred_fallthru
        _
    $region6: #{tpu_custom_call.1} parent=1 // loop_footer
      %s17 = sadd.s32 1, %s13
    $region7: #{tpu_custom_call.1} parent=1 // loop_footer_branch
      %12 = sbr.rel target = $region3
    $region8: #{tpu_custom_call.1} parent=1 // loop_exit
      _
    %521 = vsyncpa [#allocation3], 1
    %s522 = scalar_lea.sflag [#allocation3], 1
    %523 = vsyncpa %s522, 1
    %524 = vsyncpa [#allocation5], 1

</llo_original>
